<compile_context>
chip_gen: v7x
topology: tpu7x:2x2x1
jax: 0.10.0
libtpu: 0.0.40
codegen_flags: <defaults>
</compile_context>

<pallas_src>
import functools

import jax
import jax.numpy as jnp
from jax import lax
from jax.experimental import pallas as pl
from jax.experimental.pallas import tpu as pltpu


# ---------------------------------------------------------------------------
# sizing helpers
# ---------------------------------------------------------------------------
def _round_up(x, m):
    return ((x + m - 1) // m) * m


def _vmem_caps():
    """(tile budget, vmem_limit_bytes) derived from the running chip."""
    cap = 64 * 1024 * 1024                        # conservative default (v7x)
    try:
        info = pltpu.get_tpu_info()
        cap = int(getattr(info, "vmem_capacity_bytes", cap)) or cap
    except Exception:
        pass
    budget = max(8 * 1024 * 1024, int(cap * 0.40))
    limit = max(32 * 1024 * 1024, min(int(cap * 0.75), 96 * 1024 * 1024))
    return budget, limit


def _pick_tile_rows(rows, in_cols, out_cols, *, in_itemsize, out_itemsize,
                    resident_bytes, vmem_budget):
    """Largest row tile (multiple of 8, <= 2048) such that the double-buffered
    input/output blocks + f32 intermediates + resident operands fit the budget,
    while keeping >= 2 row tiles so the parallel axis spans both TensorCores."""
    per_row = (2 * in_cols * in_itemsize          # double-buffered x block
               + 2 * out_cols * out_itemsize      # double-buffered out block
               + 8 * in_cols + 4 * out_cols)      # f32 intermediates
    avail = max(vmem_budget - 2 * resident_bytes, per_row * 8)
    tile = max(8, min(2048, avail // per_row))
    tile = max(8, (tile // 8) * 8)
    half = _round_up(max((rows + 1) // 2, 8), 8)  # >= 2 tiles when rows allow
    return int(min(tile, half))


# ---------------------------------------------------------------------------
# Fused PreNorm(Linear) kernel: LayerNorm the row tile in VMEM, feed it
# straight into the resident / N-tiled weight block. One HBM read of x per
# row tile, one write of y.
# ---------------------------------------------------------------------------
def _prenorm_linear_kernel(x_ref, g_ref, b_ref, w_ref, bias_ref, o_ref, *, eps):
    x = x_ref[...].astype(jnp.float32)                       # (tile_r, dim)
    inv_d = jnp.float32(1.0 / x.shape[-1])
    s1 = jnp.sum(x, axis=-1, keepdims=True)                  # one pass: sum
    s2 = jnp.sum(x * x, axis=-1, keepdims=True)              #           sum sq
    mean = s1 * inv_d
    var = jnp.maximum(s2 * inv_d - mean * mean, 0.0)         # clamp cancellation
    inv = lax.rsqrt(var + eps)                               # EUP slot
    normed = (x - mean) * inv * g_ref[...].astype(jnp.float32) \
             + b_ref[...].astype(jnp.float32)
    if jnp.issubdtype(w_ref.dtype, jnp.floating):
        lhs = normed.astype(w_ref.dtype)                     # bf16 -> fast MXU
    else:
        lhs = normed   # TODO(synk): int8/fp8 weights need an explicit dequant path
    y = jnp.dot(lhs, w_ref[...], preferred_element_type=jnp.float32)   # MXU
    y = y + bias_ref[...].astype(jnp.float32)
    o_ref[...] = y.astype(o_ref.dtype)


def prenorm_linear_pallas(x2d, gamma, beta, w, bias, *, eps=1e-5):
    rows, dim = x2d.shape
    dim_out = w.shape[1]
    vmem_budget, vmem_limit = _vmem_caps()

    x_isz = jnp.dtype(x2d.dtype).itemsize
    o_isz = x_isz
    w_isz = jnp.dtype(w.dtype).itemsize

    # Keep W resident when it fits comfortably; otherwise tile dim_out.
    tile_n = dim_out
    if dim * dim_out * w_isz > vmem_budget // 3:
        for cand in (512, 256, 128):
            if dim_out % cand == 0:
                tile_n = cand
                break
        # TODO(synk): add a K-reduction grid axis (+ f32 VMEM accumulator +
        # pl.when init/finalize) for very large `dim` on v7x.

    resident = dim * tile_n * w_isz + (2 * dim + tile_n) * 4
    tile_r = _pick_tile_rows(rows, dim, tile_n, in_itemsize=x_isz,
                             out_itemsize=o_isz, resident_bytes=resident,
                             vmem_budget=vmem_budget)
    grid_r = pl.cdiv(rows, tile_r)
    grid_n = dim_out // tile_n

    g2d = gamma.reshape(1, dim)
    b2d = beta.reshape(1, dim)
    bias2d = bias.reshape(1, dim_out)

    w_bytes = dim * dim_out * w_isz * (1 if grid_n == 1 else grid_r)
    cost = pl.CostEstimate(
        flops=2 * rows * dim * dim_out + 10 * rows * dim,
        transcendentals=rows,
        bytes_accessed=int(rows * dim * x_isz + rows * dim_out * o_isz
                           + w_bytes + (2 * dim + dim_out) * 4),
    )

    return pl.pallas_call(
        functools.partial(_prenorm_linear_kernel, eps=eps),
        out_shape=jax.ShapeDtypeStruct((rows, dim_out), x2d.dtype),
        grid_spec=pltpu.PrefetchScalarGridSpec(
            num_scalar_prefetch=0,
            grid=(grid_r, grid_n),            # N innermost: x block reused over N
            in_specs=[
                pl.BlockSpec((tile_r, dim), lambda i, j: (i, 0)),    # x tile
                pl.BlockSpec((1, dim), lambda i, j: (0, 0)),         # gamma
                pl.BlockSpec((1, dim), lambda i, j: (0, 0)),         # beta
                pl.BlockSpec((dim, tile_n), lambda i, j: (0, j)),    # W block
                pl.BlockSpec((1, tile_n), lambda i, j: (0, j)),      # bias block
            ],
            out_specs=pl.BlockSpec((tile_r, tile_n), lambda i, j: (i, j)),
        ),
        compiler_params=pltpu.CompilerParams(
            dimension_semantics=("parallel", "parallel"),
            vmem_limit_bytes=vmem_limit,
        ),
        cost_estimate=cost,
    )(x2d, g2d, b2d, w, bias2d)


# ---------------------------------------------------------------------------
# Standalone tiled LayerNorm kernel (fallback path for a generic `fn`),
# optionally fusing a pure elementwise fn before the store.
# ---------------------------------------------------------------------------
def _layernorm_kernel(x_ref, g_ref, b_ref, o_ref, *, eps, elementwise_fn=None):
    x = x_ref[...].astype(jnp.float32)
    inv_d = jnp.float32(1.0 / x.shape[-1])
    s1 = jnp.sum(x, axis=-1, keepdims=True)
    s2 = jnp.sum(x * x, axis=-1, keepdims=True)
    mean = s1 * inv_d
    var = jnp.maximum(s2 * inv_d - mean * mean, 0.0)
    inv = lax.rsqrt(var + eps)
    normed = (x - mean) * inv * g_ref[...].astype(jnp.float32) \
             + b_ref[...].astype(jnp.float32)
    if elementwise_fn is not None:
        normed = elementwise_fn(normed)
    o_ref[...] = normed.astype(o_ref.dtype)


def layernorm_pallas(x2d, gamma, beta, *, eps=1e-5, elementwise_fn=None):
    rows, dim = x2d.shape
    vmem_budget, vmem_limit = _vmem_caps()
    x_isz = jnp.dtype(x2d.dtype).itemsize
    tile_r = _pick_tile_rows(rows, dim, dim, in_itemsize=x_isz, out_itemsize=x_isz,
                             resident_bytes=2 * dim * 4,     # gamma/beta only
                             vmem_budget=vmem_budget)
    grid_r = pl.cdiv(rows, tile_r)
    return pl.pallas_call(
        functools.partial(_layernorm_kernel, eps=eps, elementwise_fn=elementwise_fn),
        out_shape=jax.ShapeDtypeStruct((rows, dim), x2d.dtype),
        grid_spec=pltpu.PrefetchScalarGridSpec(
            num_scalar_prefetch=0,
            grid=(grid_r,),
            in_specs=[
                pl.BlockSpec((tile_r, dim), lambda i: (i, 0)),
                pl.BlockSpec((1, dim), lambda i: (0, 0)),
                pl.BlockSpec((1, dim), lambda i: (0, 0)),
            ],
            out_specs=pl.BlockSpec((tile_r, dim), lambda i: (i, 0)),
        ),
        compiler_params=pltpu.CompilerParams(
            dimension_semantics=("parallel",),
            vmem_limit_bytes=vmem_limit,
        ),
    )(x2d, gamma.reshape(1, dim), beta.reshape(1, dim))


# ---------------------------------------------------------------------------
# Tiled Linear kernel (used when the Linear fn is called on its own).
# ---------------------------------------------------------------------------
def _linear_kernel(x_ref, w_ref, b_ref, o_ref):
    x = x_ref[...]
    if jnp.issubdtype(w_ref.dtype, jnp.floating) and w_ref.dtype != x.dtype:
        x = x.astype(w_ref.dtype)
    y = jnp.dot(x, w_ref[...], preferred_element_type=jnp.float32)
    o_ref[...] = (y + b_ref[...].astype(jnp.float32)).astype(o_ref.dtype)


def linear_pallas(x2d, w, b):
    rows, dim = x2d.shape
    dim_out = w.shape[1]
    vmem_budget, vmem_limit = _vmem_caps()
    x_isz = jnp.dtype(x2d.dtype).itemsize
    w_isz = jnp.dtype(w.dtype).itemsize

    tile_n = dim_out
    if dim * dim_out * w_isz > vmem_budget // 3:
        for cand in (512, 256, 128):
            if dim_out % cand == 0:
                tile_n = cand
                break

    resident = dim * tile_n * w_isz + tile_n * 4
    tile_r = _pick_tile_rows(rows, dim, tile_n, in_itemsize=x_isz,
                             out_itemsize=x_isz, resident_bytes=resident,
                             vmem_budget=vmem_budget)
    grid_r = pl.cdiv(rows, tile_r)
    grid_n = dim_out // tile_n

    return pl.pallas_call(
        _linear_kernel,
        out_shape=jax.ShapeDtypeStruct((rows, dim_out), x2d.dtype),
        grid_spec=pltpu.PrefetchScalarGridSpec(
            num_scalar_prefetch=0,
            grid=(grid_r, grid_n),
            in_specs=[
                pl.BlockSpec((tile_r, dim), lambda i, j: (i, 0)),
                pl.BlockSpec((dim, tile_n), lambda i, j: (0, j)),
                pl.BlockSpec((1, tile_n), lambda i, j: (0, j)),
            ],
            out_specs=pl.BlockSpec((tile_r, tile_n), lambda i, j: (i, j)),
        ),
        compiler_params=pltpu.CompilerParams(
            dimension_semantics=("parallel", "parallel"),
            vmem_limit_bytes=vmem_limit,
        ),
    )(x2d, w, b.reshape(1, dim_out))


# ---------------------------------------------------------------------------
# Module wrappers mirroring the PyTorch PreNorm(dim, fn).
# ---------------------------------------------------------------------------
class PallasLinear:
    """y = x @ W + b backed by a Pallas kernel (W may be bf16 for fast MXU)."""

    def __init__(self, w, b):
        self.w = w
        self.b = b

    def __call__(self, x):
        lead = x.shape[:-1]
        out = linear_pallas(x.reshape(-1, x.shape[-1]), self.w, self.b)
        return out.reshape(*lead, self.w.shape[1])


class PallasElementwise:
    """Marks `fn` as a pure elementwise jnp function that is safe to fuse into
    the LayerNorm kernel (applied to the normalized tile before the store)."""

    def __init__(self, fn):
        self.fn = fn

    def __call__(self, x):
        return self.fn(x)


class PreNormPallas:
    """PreNorm: x -> LayerNorm(x) -> fn(LayerNorm(x), *args, **kwargs).

    * fn is PallasLinear (no extra args): LayerNorm + matmul fused in one
      pallas_call (no HBM round-trip for the normalized tensor).
    * fn is PallasElementwise (no extra args): fn is fused into the LayerNorm
      kernel before the store.
    * otherwise: tiled LayerNorm kernel, then the generic fn on its result.
    """

    def __init__(self, dim, fn, *, eps=1e-5):
        self.dim = dim
        self.fn = fn
        self.eps = eps
        # nn.LayerNorm default init: weight = ones, bias = zeros
        self.gamma = jnp.ones((dim,), dtype=jnp.float32)
        self.beta = jnp.zeros((dim,), dtype=jnp.float32)

    def __call__(self, x, *args, **kwargs):
        lead = x.shape[:-1]
        x2d = x.reshape(-1, self.dim)
        if isinstance(self.fn, PallasLinear) and not args and not kwargs:
            out = prenorm_linear_pallas(x2d, self.gamma, self.beta,
                                        self.fn.w, self.fn.b, eps=self.eps)
            return out.reshape(*lead, self.fn.w.shape[1])
        if isinstance(self.fn, PallasElementwise) and not args and not kwargs:
            out = layernorm_pallas(x2d, self.gamma, self.beta, eps=self.eps,
                                   elementwise_fn=self.fn.fn)
            return out.reshape(*lead, self.dim)
        # TODO(synk): arbitrary `fn` cannot be fused generically; LayerNorm
        # kernel runs first, then fn is applied at the JAX level.
        normed = layernorm_pallas(x2d, self.gamma, self.beta, eps=self.eps)
        return self.fn(normed.reshape(*lead, self.dim), *args, **kwargs)


if __name__ == "__main__":
    key = jax.random.PRNGKey(0)
    k_x, k_w, k_b = jax.random.split(key, 3)

    # dim=128 keeps the lane axis vreg-dense; rows=16 -> two row tiles.
    batch, seq, dim = 2, 8, 128
    eps = 1e-5
    x = jax.random.normal(k_x, (batch, seq, dim), dtype=jnp.float32)
    # Weights stored in bf16 (fast MXU path, half the DMA); bias stays f32.
    w = (jax.random.normal(k_w, (dim, dim), dtype=jnp.float32) * 0.02
         ).astype(jnp.bfloat16)
    b = jax.random.normal(k_b, (dim,), dtype=jnp.float32) * 0.02

    # pure-JAX reference pieces
    mean = jnp.mean(x, axis=-1, keepdims=True)
    var = jnp.mean((x - mean) ** 2, axis=-1, keepdims=True)
    normed_ref = (x - mean) / jnp.sqrt(var + eps)
    ref_lin = jnp.einsum(
        "bsd,de->bse",
        normed_ref.astype(jnp.bfloat16).astype(jnp.float32),
        w.astype(jnp.float32),
        precision=lax.Precision.HIGHEST) + b

    # --- fused PreNorm(Linear) path --------------------------------------
    prenorm = PreNormPallas(dim, PallasLinear(w, b), eps=eps)
    out = jax.block_until_ready(prenorm(x))
    assert out.shape == (batch, seq, dim)
    assert jnp.allclose(out, ref_lin, atol=2e-3, rtol=2e-3), \
        "fused PreNorm(Linear) mismatch"

    # --- fused LayerNorm + elementwise fn path ----------------------------
    prenorm_ew = PreNormPallas(dim, PallasElementwise(lambda h: h * 2.0), eps=eps)
    out2 = jax.block_until_ready(prenorm_ew(x))
    assert jnp.allclose(out2, normed_ref * 2.0, atol=2e-4, rtol=2e-4), \
        "fused elementwise path mismatch"

    # --- generic (unfused) fallback path ----------------------------------
    prenorm_gen = PreNormPallas(dim, lambda h: jnp.tanh(h), eps=eps)
    out3 = jax.block_until_ready(prenorm_gen(x))
    assert jnp.allclose(out3, jnp.tanh(normed_ref), atol=2e-4, rtol=2e-4), \
        "generic fallback mismatch"

    # --- standalone Linear kernel -----------------------------------------
    lin = PallasLinear(w, b)
    out4 = jax.block_until_ready(lin(x))
    ref4 = jnp.einsum("bsd,de->bse",
                      x.astype(jnp.bfloat16).astype(jnp.float32),
                      w.astype(jnp.float32),
                      precision=lax.Precision.HIGHEST) + b
    assert jnp.allclose(out4, ref4, atol=2e-3, rtol=2e-3), "linear mismatch"

    print("KERNEL_OK")
</pallas_src>

<mosaic_0001>
module attributes {stable_mosaic.version = 11 : i64} {
  func.func @_prenorm_linear_kernel(%arg0: i32, %arg1: i32, %arg2: memref<8x128xf32, #tpu.memory_space<vmem>>, %arg3: memref<1x128xf32, #tpu.memory_space<vmem>>, %arg4: memref<1x128xf32, #tpu.memory_space<vmem>>, %arg5: memref<128x128xbf16, #tpu.memory_space<vmem>>, %arg6: memref<1x128xf32, #tpu.memory_space<vmem>>, %arg7: memref<8x128xf32, #tpu.memory_space<vmem>>) attributes {dimension_semantics = [#tpu.dimension_semantics<parallel>, #tpu.dimension_semantics<parallel>], iteration_bounds = array<i64: 2, 1>, scalar_prefetch = 0 : i64, scratch_operands = 0 : i64, tpu.core_type = #tpu.core_type<tc>, window_params = [{transform_indices = @transform_0, window_bounds = array<i64: 8, 128>}, {pipeline_mode = #tpu.pipeline_mode<synchronous>, transform_indices = @transform_1, window_bounds = array<i64: 1, 128>}, {pipeline_mode = #tpu.pipeline_mode<synchronous>, transform_indices = @transform_2, window_bounds = array<i64: 1, 128>}, {transform_indices = @transform_3, window_bounds = array<i64: 128, 128>}, {transform_indices = @transform_4, window_bounds = array<i64: 1, 128>}, {transform_indices = @transform_5, window_bounds = array<i64: 8, 128>}]} {
    %c0 = arith.constant 0 : index
    %c0_0 = arith.constant 0 : index
    %0 = vector.load %arg2[%c0, %c0_0] : memref<8x128xf32, #tpu.memory_space<vmem>>, vector<8x128xf32>
    %cst = arith.constant dense<0.000000e+00> : vector<8xf32>
    %1 = vector.multi_reduction <add>, %0, %cst [1] : vector<8x128xf32> to vector<8xf32>
    %2 = vector.shape_cast %1 : vector<8xf32> to vector<8x1xf32>
    %3 = arith.mulf %0, %0 : vector<8x128xf32>
    %cst_1 = arith.constant dense<0.000000e+00> : vector<8xf32>
    %4 = vector.multi_reduction <add>, %3, %cst_1 [1] : vector<8x128xf32> to vector<8xf32>
    %5 = vector.shape_cast %4 : vector<8xf32> to vector<8x1xf32>
    %cst_2 = arith.constant 7.812500e-03 : f32
    %6 = vector.broadcast %cst_2 : f32 to vector<8x1xf32>
    %7 = arith.mulf %2, %6 : vector<8x1xf32>
    %cst_3 = arith.constant 7.812500e-03 : f32
    %8 = vector.broadcast %cst_3 : f32 to vector<8x1xf32>
    %9 = arith.mulf %5, %8 : vector<8x1xf32>
    %10 = arith.mulf %7, %7 : vector<8x1xf32>
    %11 = arith.subf %9, %10 : vector<8x1xf32>
    %cst_4 = arith.constant 0.000000e+00 : f32
    %12 = vector.broadcast %cst_4 : f32 to vector<8x1xf32>
    %13 = arith.maximumf %11, %12 : vector<8x1xf32>
    %cst_5 = arith.constant 9.99999974E-6 : f32
    %14 = vector.broadcast %cst_5 : f32 to vector<8x1xf32>
    %15 = arith.addf %13, %14 : vector<8x1xf32>
    %16 = math.rsqrt %15 : vector<8x1xf32>
    %17 = vector.broadcast %7 : vector<8x1xf32> to vector<8x128xf32>
    %18 = arith.subf %0, %17 : vector<8x128xf32>
    %19 = vector.broadcast %16 : vector<8x1xf32> to vector<8x128xf32>
    %20 = arith.mulf %18, %19 : vector<8x128xf32>
    %c0_6 = arith.constant 0 : index
    %c0_7 = arith.constant 0 : index
    %21 = vector.load %arg3[%c0_6, %c0_7] : memref<1x128xf32, #tpu.memory_space<vmem>>, vector<1x128xf32>
    %22 = vector.broadcast %21 : vector<1x128xf32> to vector<8x128xf32>
    %23 = arith.mulf %20, %22 : vector<8x128xf32>
    %c0_8 = arith.constant 0 : index
    %c0_9 = arith.constant 0 : index
    %24 = vector.load %arg4[%c0_8, %c0_9] : memref<1x128xf32, #tpu.memory_space<vmem>>, vector<1x128xf32>
    %25 = vector.broadcast %24 : vector<1x128xf32> to vector<8x128xf32>
    %26 = arith.addf %23, %25 : vector<8x128xf32>
    %27 = arith.truncf %26 : vector<8x128xf32> to vector<8x128xbf16>
    %c0_10 = arith.constant 0 : index
    %c0_11 = arith.constant 0 : index
    %28 = vector.load %arg5[%c0_10, %c0_11] : memref<128x128xbf16, #tpu.memory_space<vmem>>, vector<128x128xbf16>
    %cst_12 = arith.constant dense<0.000000e+00> : vector<8x128xf32>
    %29 = tpu.matmul %27, %28, %cst_12 {dimension_numbers = #tpu.dot_dimension_numbers<[1], [0], [0], [1], [0, 0, 1, 1], [], []>} : vector<8x128xbf16>, vector<128x128xbf16>, vector<8x128xf32> -> vector<8x128xf32>
    %c0_13 = arith.constant 0 : index
    %c0_14 = arith.constant 0 : index
    %30 = vector.load %arg6[%c0_13, %c0_14] : memref<1x128xf32, #tpu.memory_space<vmem>>, vector<1x128xf32>
    %31 = vector.broadcast %30 : vector<1x128xf32> to vector<8x128xf32>
    %32 = arith.addf %29, %31 : vector<8x128xf32>
    %c0_15 = arith.constant 0 : index
    %c0_16 = arith.constant 0 : index
    %33 = vector.load %arg7[%c0_15, %c0_16] : memref<8x128xf32, #tpu.memory_space<vmem>>, vector<8x128xf32>
    tpu.vector_store %arg7[%c0_15, %c0_16], %32 {strides = array<i32>} : memref<8x128xf32, #tpu.memory_space<vmem>>, vector<8x128xf32>,
    return
  }
  func.func @transform_0(%arg0: i32, %arg1: i32) -> (i32, i32) {
    %c0_i32 = arith.constant 0 : i32
    %c0_i32_0 = arith.constant 0 : i32
    return %arg0, %c0_i32 : i32, i32
  }
  func.func @transform_1(%arg0: i32, %arg1: i32) -> (i32, i32) {
    %c0_i32 = arith.constant 0 : i32
    %c0_i32_0 = arith.constant 0 : i32
    %c0_i32_1 = arith.constant 0 : i32
    return %c0_i32, %c0_i32_0 : i32, i32
  }
  func.func @transform_2(%arg0: i32, %arg1: i32) -> (i32, i32) {
    %c0_i32 = arith.constant 0 : i32
    %c0_i32_0 = arith.constant 0 : i32
    %c0_i32_1 = arith.constant 0 : i32
    return %c0_i32, %c0_i32_0 : i32, i32
  }
  func.func @transform_3(%arg0: i32, %arg1: i32) -> (i32, i32) {
    %c0_i32 = arith.constant 0 : i32
    %c0_i32_0 = arith.constant 0 : i32
    return %c0_i32, %arg1 : i32, i32
  }
  func.func @transform_4(%arg0: i32, %arg1: i32) -> (i32, i32) {
    %c0_i32 = arith.constant 0 : i32
    %c0_i32_0 = arith.constant 0 : i32
    return %c0_i32, %arg1 : i32, i32
  }
  func.func @transform_5(%arg0: i32, %arg1: i32) -> (i32, i32) {
    %c0_i32 = arith.constant 0 : i32
    return %arg0, %arg1 : i32, i32
  }
}

</mosaic_0001>

<llo_original>
// kernel: tpu_custom_call.1
$region0: #{tpu_custom_call.1}
  #allocation0 [shape = 'u32[]', space=smem, size = 0x4, offset = 0x4, fixed_abs, tag = 'smem constant byte address 0x4 - core index']
  #allocation1 [shape = 'u32[144,128]{1,0:T(1,128)}', space=vmem, size = 0x12000, scoped, tag = 'internal scratch']
  %s0 = inlined_call_operand.hbm [shape: f32[16,128], index: 0, kind: input, shape index: {}]
  %s1 = inlined_call_operand.vmem [shape: f32[1,128], index: 1, kind: input, shape index: {}]
  %s2 = inlined_call_operand.vmem [shape: f32[1,128], index: 2, kind: input, shape index: {}]
  %s3 = inlined_call_operand.hbm [shape: bf16[128,128], index: 3, kind: input, shape index: {}]
  %s4 = inlined_call_operand.vmem [shape: f32[1,128], index: 4, kind: input, shape index: {}]
  %s5 = inlined_call_operand.hbm [shape: f32[16,128], index: 5, kind: output, shape index: {}]
  %s6 = sld [smem:[#allocation0]]
  $region61: #{tpu_custom_call.1} parent=0
    _
  %s8 = ssub.s32 1, %s6
  %s9 = scalar_select 0, %s8, %s6
  $region1: #{tpu_custom_call.1} parent=0
    #allocation2 [shape = 'u8[8192]{0}', space=vmem, size = 0x2000, scoped, tag = 'input window, operand 0']
    #allocation3 [shape = 's32[2]{0}', space=sflag, size = 0x8, scoped, tag = 'scoped memory for tpu_custom_call.1']
    #allocation4 [shape = 's32[2]{0}', space=sflag, size = 0x8, scoped, tag = 'scoped memory for tpu_custom_call.1']
    #allocation5 [shape = 'u8[32768]{0}', space=vmem, size = 0x8000, scoped, tag = 'input window, operand 3, single buffered']
    #allocation6 [shape = 's32[1]{0}', space=sflag, size = 0x4, scoped, tag = 'scoped memory for tpu_custom_call.1']
    #allocation7 [shape = 'u8[8192]{0}', space=vmem, size = 0x2000, scoped, tag = 'output window, operand 0']
    %10 = vsyncpa [#allocation3], 0
    %s11 = scalar_lea.sflag [#allocation3], 1
    %12 = vsyncpa %s11, 0
    %13 = vsyncpa [#allocation6], 0
    %14 = vsyncpa [#allocation4], 0
    %s15 = scalar_lea.sflag [#allocation4], 1
    %16 = vsyncpa %s15, 0
    loop: start=0, step=1, limit=4
    $region2: #{tpu_custom_call.1} parent=1 // loop_pre_header
      _
    $region3: #{tpu_custom_call.1} parent=1 // loop_header
      %s18 = sphi 0, %s22
      %p19 = scmp.ge.s32.totalorder %s18, 4
      %s25 = sphi 0, %s37
      %s26 = sphi 0, %s33
      %s27 = sphi 0, %s25
      %s28 = sphi 0, %s26
      %s29 = sphi 0, %s27
      %s30 = sphi 0, %s28
      %s40 = sphi 0, %s42
      %s43 = sphi 0, %s40
      %s44 = sphi 0, %s43
      %s60 = sphi 0, %s44
      %s64 = sphi 0, %s64
      %s66 = sphi 0, %s64
      %s67 = sphi 0, %s66
      %s81 = sphi 0, %s67
      %s85 = sphi 0, %s85
      %s87 = sphi 0, %s85
      %s88 = sphi 0, %s87
      %s102 = sphi 0, %s88
      %s108 = sphi 0, %s110
      %s111 = sphi 0, %s108
      %s112 = sphi 0, %s111
      %s128 = sphi 0, %s112
      %s134 = sphi 0, %s136
      %s137 = sphi 0, %s134
      %s138 = sphi 0, %s137
      %s154 = sphi 0, %s138
      %s162 = sphi 0, %s164
      %s165 = sphi 0, %s162
      %s166 = sphi 0, %s165
      %s182 = sphi 0, %s166
    $region4: #{tpu_custom_call.1} parent=1 // loop_header_branch
      %21 = sbr.rel (%p19) target = $region8
    $region5: #{tpu_custom_call.1} parent=1 // loop_body
      %s23 = ssub.s32 %s18, 1
      %s24 = ssub.s32 %s18, 2
      %s31 = sadd.s32 1, %s26
      %p32 = scmp.ge.s32.totalorder %s31, 1
      %s33 = scalar_select %p32, 0, %s31
      %s34 = sadd.s32 1, %s25
      %s35 = scalar_select %p32, %s34, %s25
      %p36 = scmp.ge.s32.totalorder %s35, 2
      %s37 = scalar_select %p36, 0, %s35
      %s38 = ssub.s32 %s25, %s37
      %p39 = scmp.eq.s32.totalorder %s38, 0
      %s41 = sadd.s32 %s40, 1
      %s42 = scalar_select %p39, %s40, %s41
      %p45 = pneg %p39
      %p46 = scmp.eq.s32.totalorder %s18, 1
      %p47 = por %p45, %p46
      %p48 = scmp.ne.s32.totalorder %s40, %s43
      %p49 = scmp.eq.s32.totalorder %s18, 0
      %p50 = por %p48, %p49
      %p51 = scmp.ne.s32.totalorder %s40, %s43
      %p52 = scmp.eq.s32.totalorder %s23, 1
      %p53 = por %p51, %p52
      %p54 = scmp.ne.s32.totalorder %s43, %s44
      %p55 = scmp.eq.s32.totalorder %s23, 0
      %p56 = por %p54, %p55
      %p57 = scmp.ne.s32.totalorder %s43, %s44
      %p58 = scmp.eq.s32.totalorder %s24, 1
      %p59 = por %p57, %p58
      %p61 = scmp.ne.s32.totalorder %s44, %s60
      %p62 = scmp.eq.s32.totalorder %s24, 0
      %p63 = por %p61, %p62
      %s65 = sadd.s32 %s64, 1
      %p68 = scmp.eq.s32.totalorder %s18, 1
      %p69 = scmp.ne.s32.totalorder %s64, %s66
      %p70 = scmp.eq.s32.totalorder %s18, 0
      %p71 = por %p69, %p70
      %p72 = scmp.ne.s32.totalorder %s64, %s66
      %p73 = scmp.eq.s32.totalorder %s23, 1
      %p74 = por %p72, %p73
      %p75 = scmp.ne.s32.totalorder %s66, %s67
      %p76 = scmp.eq.s32.totalorder %s23, 0
      %p77 = por %p75, %p76
      %p78 = scmp.ne.s32.totalorder %s66, %s67
      %p79 = scmp.eq.s32.totalorder %s24, 1
      %p80 = por %p78, %p79
      %p82 = scmp.ne.s32.totalorder %s67, %s81
      %p83 = scmp.eq.s32.totalorder %s24, 0
      %p84 = por %p82, %p83
      %s86 = sadd.s32 %s85, 1
      %p89 = scmp.eq.s32.totalorder %s18, 1
      %p90 = scmp.ne.s32.totalorder %s85, %s87
      %p91 = scmp.eq.s32.totalorder %s18, 0
      %p92 = por %p90, %p91
      %p93 = scmp.ne.s32.totalorder %s85, %s87
      %p94 = scmp.eq.s32.totalorder %s23, 1
      %p95 = por %p93, %p94
      %p96 = scmp.ne.s32.totalorder %s87, %s88
      %p97 = scmp.eq.s32.totalorder %s23, 0
      %p98 = por %p96, %p97
      %p99 = scmp.ne.s32.totalorder %s87, %s88
      %p100 = scmp.eq.s32.totalorder %s24, 1
      %p101 = por %p99, %p100
      %p103 = scmp.ne.s32.totalorder %s88, %s102
      %p104 = scmp.eq.s32.totalorder %s24, 0
      %p105 = por %p103, %p104
      %s106 = ssub.s32 %s26, %s33
      %p107 = scmp.eq.s32.totalorder %s106, 0
      %s109 = sadd.s32 %s108, 1
      %s110 = scalar_select %p107, %s108, %s109
      %p113 = pneg %p107
      %p114 = scmp.eq.s32.totalorder %s18, 1
      %p115 = por %p113, %p114
      %p116 = scmp.ne.s32.totalorder %s108, %s111
      %p117 = scmp.eq.s32.totalorder %s18, 0
      %p118 = por %p116, %p117
      %p119 = scmp.ne.s32.totalorder %s108, %s111
      %p120 = scmp.eq.s32.totalorder %s23, 1
      %p121 = por %p119, %p120
      %p122 = scmp.ne.s32.totalorder %s111, %s112
      %p123 = scmp.eq.s32.totalorder %s23, 0
      %p124 = por %p122, %p123
      %p125 = scmp.ne.s32.totalorder %s111, %s112
      %p126 = scmp.eq.s32.totalorder %s24, 1
      %p127 = por %p125, %p126
      %p129 = scmp.ne.s32.totalorder %s112, %s128
      %p130 = scmp.eq.s32.totalorder %s24, 0
      %p131 = por %p129, %p130
      %s132 = ssub.s32 %s26, %s33
      %p133 = scmp.eq.s32.totalorder %s132, 0
      %s135 = sadd.s32 %s134, 1
      %s136 = scalar_select %p133, %s134, %s135
      %p139 = pneg %p133
      %p140 = scmp.eq.s32.totalorder %s18, 1
      %p141 = por %p139, %p140
      %p142 = scmp.ne.s32.totalorder %s134, %s137
      %p143 = scmp.eq.s32.totalorder %s18, 0
      %p144 = por %p142, %p143
      %p145 = scmp.ne.s32.totalorder %s134, %s137
      %p146 = scmp.eq.s32.totalorder %s23, 1
      %p147 = por %p145, %p146
      %p148 = scmp.ne.s32.totalorder %s137, %s138
      %p149 = scmp.eq.s32.totalorder %s23, 0
      %p150 = por %p148, %p149
      %p151 = scmp.ne.s32.totalorder %s137, %s138
      %p152 = scmp.eq.s32.totalorder %s24, 1
      %p153 = por %p151, %p152
      %p155 = scmp.ne.s32.totalorder %s138, %s154
      %p156 = scmp.eq.s32.totalorder %s24, 0
      %p157 = por %p155, %p156
      %s158 = ssub.s32 %s25, %s37
      %s159 = ssub.s32 %s26, %s33
      %s160 = sor.u32 %s158, %s159
      %p161 = scmp.eq.s32.totalorder %s160, 0
      %s163 = sadd.s32 %s162, 1
      %s164 = scalar_select %p161, %s162, %s163
      %p167 = pneg %p161
      %p168 = scmp.eq.s32.totalorder %s18, 1
      %p169 = por %p167, %p168
      %p170 = scmp.ne.s32.totalorder %s162, %s165
      %p171 = scmp.eq.s32.totalorder %s18, 0
      %p172 = por %p170, %p171
      %p173 = scmp.ne.s32.totalorder %s162, %s165
      %p174 = scmp.eq.s32.totalorder %s23, 1
      %p175 = por %p173, %p174
      %p176 = scmp.ne.s32.totalorder %s165, %s166
      %p177 = scmp.eq.s32.totalorder %s23, 0
      %p178 = por %p176, %p177
      %p179 = scmp.ne.s32.totalorder %s165, %s166
      %p180 = scmp.eq.s32.totalorder %s24, 1
      %p181 = por %p179, %p180
      %p183 = scmp.ne.s32.totalorder %s166, %s182
      %p184 = scmp.eq.s32.totalorder %s24, 0
      %p185 = por %p183, %p184
      %p186 = scmp.le.s32.totalorder 1, %s18
      %p187 = scmp.lt.s32.totalorder %s18, 3
      %p188 = pnand %p186, %p187
      %p189 = pneg %p188
      // Predicated region
      $region9: #{tpu_custom_call.1} parent=5 // pred_check
        _
      $region10: #{tpu_custom_call.1} parent=5 // pred_check_branch
        %191 = sbr.rel (%p188) target = $region12
      $region11: #{tpu_custom_call.1} parent=5 // pred_region
        %s192 = ssub.s32 %s18, 1
        // Predicated region
        $region13: #{tpu_custom_call.1} parent=11 // pred_check
          %p193 = pneg %p77
        $region14: #{tpu_custom_call.1} parent=11 // pred_check_branch
          %195 = sbr.rel (%p193) target = $region16
        $region15: #{tpu_custom_call.1} parent=11 // pred_region
          _
        $region16: #{tpu_custom_call.1} parent=11 // pred_fallthru
          _
        // Predicated region
        $region17: #{tpu_custom_call.1} parent=11 // pred_check
          %p196 = pneg %p98
        $region18: #{tpu_custom_call.1} parent=11 // pred_check_branch
          %198 = sbr.rel (%p196) target = $region20
        $region19: #{tpu_custom_call.1} parent=11 // pred_region
          _
        $region20: #{tpu_custom_call.1} parent=11 // pred_fallthru
          _
        // Predicated region
        $region21: #{tpu_custom_call.1} parent=11 // pred_check
          %p199 = pneg %p124
        $region22: #{tpu_custom_call.1} parent=11 // pred_check_branch
          %201 = sbr.rel (%p199) target = $region24
        $region23: #{tpu_custom_call.1} parent=11 // pred_region
          %s203 = ssub.s32 1024, 1024
          %204 = vsyncadd [#allocation6], %s203
          %s205 = smul.addr %s28, 64
          %s206 = scalar_lea.hbm %s3, %s205
          %s207 = sshll.u32 [#allocation5], 4
          %s208 = int_to_ptr.vmem [resolvable:$true] %s207
          %213 = dma.hbm_to_vmem [thread:$0]  %s206, 1024, %s208, [#allocation6], 64, 64, 4
        $region24: #{tpu_custom_call.1} parent=11 // pred_fallthru
          _
        // Predicated region
        $region25: #{tpu_custom_call.1} parent=11 // pred_check
          %p214 = pneg %p150
        $region26: #{tpu_custom_call.1} parent=11 // pred_check_branch
          %216 = sbr.rel (%p214) target = $region28
        $region27: #{tpu_custom_call.1} parent=11 // pred_region
          %p217 = scmp.lt.s32.totalorder %s28, 0
          %s218 = scalar_select %p217, %s28, 0
          %s219 = scalar_lea.vmem %s4, %s218
        $region28: #{tpu_custom_call.1} parent=11 // pred_fallthru
          _
      $region12: #{tpu_custom_call.1} parent=5 // pred_fallthru
        _
      %p220 = scmp.lt.s32.totalorder %s18, 2
      // Predicated region
      $region29: #{tpu_custom_call.1} parent=5 // pred_check
        %p221 = pneg %p220
      $region30: #{tpu_custom_call.1} parent=5 // pred_check_branch
        %223 = sbr.rel (%p221) target = $region32
      $region31: #{tpu_custom_call.1} parent=5 // pred_region
        // Predicated region
        $region33: #{tpu_custom_call.1} parent=31 // pred_check
          %p224 = pneg %p50
        $region34: #{tpu_custom_call.1} parent=31 // pred_check_branch
          %226 = sbr.rel (%p224) target = $region36
        $region35: #{tpu_custom_call.1} parent=31 // pred_region
          %s227 = sand.u32 %s40, 1
          %s228 = scalar_lea.sflag [#allocation3], %s227
          %s229 = sand.u32 %s40, 1
          %s230 = smul.addr %s229, 8
          %s231 = scalar_lea.vmem [#allocation2], %s230
          %s233 = ssub.s32 128, 128
          %234 = vsyncadd %s228, %s233
          %s235 = smul.addr %s25, 128
          %s236 = scalar_lea.hbm %s0, %s235
          %s238 = sshll.u32 %s231, 4
          %s239 = int_to_ptr.vmem [resolvable:$true] %s238
          %241 = dma.hbm_to_vmem [thread:$0]  %s236, 128, %s239, %s228
        $region36: #{tpu_custom_call.1} parent=31 // pred_fallthru
          _
      $region32: #{tpu_custom_call.1} parent=5 // pred_fallthru
        _
      %p242 = scmp.le.s32.totalorder 1, %s18
      %p243 = scmp.lt.s32.totalorder %s18, 3
      %p244 = pnand %p242, %p243
      %p245 = pneg %p244
      // Predicated region
      $region37: #{tpu_custom_call.1} parent=5 // pred_check
        _
      $region38: #{tpu_custom_call.1} parent=5 // pred_check_branch
        %247 = sbr.rel (%p244) target = $region40
      $region39: #{tpu_custom_call.1} parent=5 // pred_region
        %s248 = ssub.s32 %s18, 1
        %s249 = sand.u32 %s43, 1
        %s250 = scalar_lea.sflag [#allocation3], %s249
        %s251 = sand.u32 %s43, 1
        %s252 = smul.addr %s251, 8
        %s253 = scalar_lea.vmem [#allocation2], %s252
        // Predicated region
        $region41: #{tpu_custom_call.1} parent=39 // pred_check
          %p254 = pneg %p56
        $region42: #{tpu_custom_call.1} parent=39 // pred_check_branch
          %256 = sbr.rel (%p254) target = $region44
        $region43: #{tpu_custom_call.1} parent=39 // pred_region
          %257 = dma.done %s250, 128
        $region44: #{tpu_custom_call.1} parent=39 // pred_fallthru
          _
        // Predicated region
        $region45: #{tpu_custom_call.1} parent=39 // pred_check
          %p258 = pneg %p124
        $region46: #{tpu_custom_call.1} parent=39 // pred_check_branch
          %260 = sbr.rel (%p258) target = $region48
        $region47: #{tpu_custom_call.1} parent=39 // pred_region
          %261 = dma.done [#allocation6], 1024
        $region48: #{tpu_custom_call.1} parent=39 // pred_fallthru
          _
        %s262 = sand.u32 %s43, 1
        %s263 = scalar_lea.sflag [#allocation3], %s262
        %s264 = sand.u32 %s43, 1
        %s265 = smul.addr %s264, 8
        %s266 = scalar_lea.vmem [#allocation2], %s265
        %p267 = pneg %p56
        %p268 = pneg %p53
        %p269 = pneg %p77
        %p270 = pneg %p74
        %p271 = pneg %p98
        %p272 = pneg %p95
        %p273 = pneg %p124
        %p274 = pneg %p121
        %p275 = scmp.lt.s32.totalorder %s28, 0
        %s276 = scalar_select %p275, %s28, 0
        %s277 = scalar_lea.vmem %s4, %s276
        %p278 = pneg %p150
        %p279 = pneg %p147
        %p280 = pneg %p178
        %p281 = pneg %p175
        %s282 = sand.u32 %s165, 1
        %s283 = scalar_lea.sflag [#allocation4], %s282
        %s284 = sand.u32 %s165, 1
        %s285 = smul.addr %s284, 8
        %s286 = scalar_lea.vmem [#allocation7], %s285
        %p287 = scmp.lt.s32.totalorder %s28, 0
        %s288 = scalar_select %p287, %s28, 0
        %s289 = scalar_lea.vmem %s4, %s288
        %v291 = vld [vmem:[%s253] sm:$0xff]
        %292 = vadd.xlane.f32.xlu0 %v291
        %v293 = vpop.xlane.xlu0 %292
        %v294 = vmul.f32 %v291, %v291
        %295 = vadd.xlane.f32.xlu0 %v294
        %v296 = vpop.xlane.xlu0 %295
        %v297 = vmul.f32 %v293, 0.0078125
        %v298 = vmul.f32 %v296, 0.0078125
        %v299 = vmul.f32 %v297, %v297
        %v300 = vsub.f32 %v298, %v299
        %v301 = vmax.f32 %v300, 0.0
        %v302 = vadd.f32 %v301, 1e-05
        %v303 = vrsqrt.pop %v302
        %v304 = vsub.f32 %v291, %v297
        %v305 = vmul.f32 %v304, %v303
        %v306 = vld [vmem:[%s1] sm:$0x1]
        %v308 = vlaneseq
        %v309 = vshrl.u32 %v308, 7
        %v310 = vsub.s32 0, %v309
        %v311 = vrot.slane %v306, %v310
        %v313 = vmul.f32 %v305, %v311
        %v314 = vld [vmem:[%s2] sm:$0x1]
        %v316 = vlaneseq
        %v317 = vshrl.u32 %v316, 7
        %v318 = vsub.s32 0, %v317
        %v319 = vrot.slane %v314, %v318
        %v321 = vadd.f32 %v313, %v319
        %v322 = vpack.c.bf16 %v321, %v321
        %v323 = vld [vmem:[#allocation5] sm:$0xf]
        %v324 = vld [vmem:[#allocation5 + $0x4] sm:$0xf]
        %v325 = vld [vmem:[#allocation5 + $0x8] sm:$0xf]
        %v326 = vld [vmem:[#allocation5 + $0xc] sm:$0xf]
        %v327 = vld [vmem:[#allocation5 + $0x10] sm:$0xf]
        %v328 = vld [vmem:[#allocation5 + $0x14] sm:$0xf]
        %v329 = vld [vmem:[#allocation5 + $0x18] sm:$0xf]
        %v330 = vld [vmem:[#allocation5 + $0x1c] sm:$0xf]
        %v331 = vld [vmem:[#allocation5 + $0x20] sm:$0xf]
        %v332 = vld [vmem:[#allocation5 + $0x24] sm:$0xf]
        %v333 = vld [vmem:[#allocation5 + $0x28] sm:$0xf]
        %v334 = vld [vmem:[#allocation5 + $0x2c] sm:$0xf]
        %v335 = vld [vmem:[#allocation5 + $0x30] sm:$0xf]
        %v336 = vld [vmem:[#allocation5 + $0x34] sm:$0xf]
        %v337 = vld [vmem:[#allocation5 + $0x38] sm:$0xf]
        %v338 = vld [vmem:[#allocation5 + $0x3c] sm:$0xf]
        %v339 = vld [vmem:[%s289] sm:$0x1]
        %v341 = vlaneseq
        %v342 = vshrl.u32 %v341, 7
        %v343 = vsub.s32 0, %v342
        %v344 = vrot.slane %v339, %v343
        %v362 = vunpack.c.l.b16 %v323
        %v363 = vunpack.c.l.b16 %v324
        %v364 = vunpack.c.l.b16 %v325
        %v365 = vunpack.c.l.b16 %v326
        %v366 = vunpack.c.l.b16 %v327
        %v367 = vunpack.c.l.b16 %v328
        %v368 = vunpack.c.l.b16 %v329
        %v369 = vunpack.c.l.b16 %v330
        %v370 = vunpack.c.l.b16 %v331
        %v371 = vunpack.c.l.b16 %v332
        %v372 = vunpack.c.l.b16 %v333
        %v373 = vunpack.c.l.b16 %v334
        %v374 = vunpack.c.l.b16 %v335
        %v375 = vunpack.c.l.b16 %v336
        %v376 = vunpack.c.l.b16 %v337
        %v377 = vunpack.c.l.b16 %v338
        %v378 = vpack.c.b16 %v363, %v362
        %v379 = vpack.c.b16 %v365, %v364
        %v380 = vpack.c.b16 %v367, %v366
        %v381 = vpack.c.b16 %v369, %v368
        %v382 = vpack.c.b16 %v371, %v370
        %v383 = vpack.c.b16 %v373, %v372
        %v384 = vpack.c.b16 %v375, %v374
        %v385 = vpack.c.b16 %v377, %v376
        %394 = vmatprep.subr.bf16.mxu0 0
        %395 = vmatpush1.bf16.msra.mxu0 %v378
        %396 = vmatprep.subr.bf16.mxu0 0
        %397 = vmatpush1.bf16.msra.mxu0 %v379
        %398 = vmatprep.subr.bf16.mxu0 0
        %399 = vmatpush1.bf16.msra.mxu0 %v380
        %400 = vmatprep.subr.bf16.mxu0 0
        %401 = vmatpush1.bf16.msra.mxu0 %v381
        %402 = vmatprep.subr.bf16.mxu0 0
        %403 = vmatpush1.bf16.msra.mxu0 %v382
        %404 = vmatprep.subr.bf16.mxu0 0
        %405 = vmatpush1.bf16.msra.mxu0 %v383
        %406 = vmatprep.subr.bf16.mxu0 0
        %407 = vmatpush1.bf16.msra.mxu0 %v384
        %408 = vmatprep.subr.bf16.mxu0 0
        %409 = vmatpush1.bf16.msra.mxu0 %v385
        %410 = vmatprep.subr.bf16.mxu0 0
        %411 = vmatpush1.bf16.msra.mxu0 0
        %412 = vmatprep.subr.bf16.mxu0 0
        %413 = vmatpush1.bf16.msra.mxu0 0
        %414 = vmatprep.subr.bf16.mxu0 0
        %415 = vmatpush1.bf16.msra.mxu0 0
        %416 = vmatprep.subr.bf16.mxu0 0
        %417 = vmatpush1.bf16.msra.mxu0 0
        %418 = vmatprep.subr.bf16.mxu0 0
        %419 = vmatpush1.bf16.msra.mxu0 0
        %420 = vmatprep.subr.bf16.mxu0 0
        %421 = vmatpush1.bf16.msra.mxu0 0
        %422 = vmatprep.subr.bf16.mxu0 0
        %423 = vmatpush1.bf16.msra.mxu0 0
        %424 = vmatprep.subr.bf16.mxu0 0
        %425 = vmatpush1.bf16.msra.mxu0 0
        %426 = vmatprep.mubr.bf16.mxu0 0
        %427 = vmatmul.mubr.bf16.gmra.mrb[0].mxu0 %v322
        %v428 = vpop.f32.mrb[0].mxu0
        %v429 = vadd.f32 %v344, %v428
        %v430 = vpop.f32.mrb[0].mxu0
        %v431 = vpop.f32.mrb[0].mxu0
        %v432 = vpop.f32.mrb[0].mxu0
        %433 = vdwg.mxu0
        %434 = vst [vmem:[%s286] sm:$0xff] %v429
        %s435 = sand.u32 %s165, 1
        %s436 = scalar_lea.sflag [#allocation4], %s435
        %s437 = sand.u32 %s165, 1
        %s438 = smul.addr %s437, 8
        %s439 = scalar_lea.vmem [#allocation7], %s438
        // Predicated region
        $region49: #{tpu_custom_call.1} parent=39 // pred_check
          %p440 = pneg %p175
        $region50: #{tpu_custom_call.1} parent=39 // pred_check_branch
          %442 = sbr.rel (%p440) target = $region52
        $region51: #{tpu_custom_call.1} parent=39 // pred_region
          %s444 = ssub.s32 128, 128
          %445 = vsyncadd %s436, %s444
          %s446 = sadd.s32 %s28, %s27
          %s447 = smul.addr %s446, 128
          %s448 = scalar_lea.hbm %s5, %s447
          %s450 = sshll.u32 %s439, 4
          %s451 = int_to_ptr.vmem [resolvable:$true] %s450
          %453 = dma.vmem_to_hbm [thread:$0]  %s451, 128, %s448, %s436
        $region52: #{tpu_custom_call.1} parent=39 // pred_fallthru
          _
      $region40: #{tpu_custom_call.1} parent=5 // pred_fallthru
        _
      %p454 = scmp.le.s32.totalorder 2, %s18
      // Predicated region
      $region53: #{tpu_custom_call.1} parent=5 // pred_check
        %p455 = pneg %p454
      $region54: #{tpu_custom_call.1} parent=5 // pred_check_branch
        %457 = sbr.rel (%p455) target = $region56
      $region55: #{tpu_custom_call.1} parent=5 // pred_region
        %s458 = ssub.s32 %s18, 2
        // Predicated region
        $region57: #{tpu_custom_call.1} parent=55 // pred_check
          %p459 = pneg %p181
        $region58: #{tpu_custom_call.1} parent=55 // pred_check_branch
          %461 = sbr.rel (%p459) target = $region60
        $region59: #{tpu_custom_call.1} parent=55 // pred_region
          %s462 = sand.u32 %s166, 1
          %s463 = scalar_lea.sflag [#allocation4], %s462
          %s464 = sand.u32 %s166, 1
          %s465 = smul.addr %s464, 8
          %s466 = scalar_lea.vmem [#allocation7], %s465
          %467 = dma.done %s463, 128
        $region60: #{tpu_custom_call.1} parent=55 // pred_fallthru
          _
      $region56: #{tpu_custom_call.1} parent=5 // pred_fallthru
        _
    $region6: #{tpu_custom_call.1} parent=1 // loop_footer
      %s22 = sadd.s32 1, %s18
    $region7: #{tpu_custom_call.1} parent=1 // loop_footer_branch
      %17 = sbr.rel target = $region3
    $region8: #{tpu_custom_call.1} parent=1 // loop_exit
      _
    %468 = vsyncpa [#allocation3], 1
    %s469 = scalar_lea.sflag [#allocation3], 1
    %470 = vsyncpa %s469, 1
    %471 = vsyncpa [#allocation6], 1
    %472 = vsyncpa [#allocation4], 1
    %s473 = scalar_lea.sflag [#allocation4], 1
    %474 = vsyncpa %s473, 1

</llo_original>
